<compile_context>
chip_gen: v5e
topology: v5e:2x2
jax: 0.10.0
libtpu: 0.0.40
codegen_flags: <defaults>
</compile_context>

<pallas_src>
import numpy as np
import jax
import jax.numpy as jnp
from jax import lax
from jax.experimental import pallas as pl
from jax.experimental.pallas import tpu as pltpu


# ----------------------------------------------------------------------------
# Pallas kernel: the data-dependent part of the LQR solve.
# inp = [x_init | target_flat]  (B, n_state + t*n_ctrl), lane-packed
# W   = host-precomputed affine-map gain (n_state + t*n_ctrl, t*n_ctrl)
# out = flattened plan (B, t*n_ctrl), written as one lane-dense store.
# ----------------------------------------------------------------------------
def lqr_affine_kernel(inp_ref, w_ref, out_ref):
    out_ref[...] = jnp.dot(
        inp_ref[...], w_ref[...],
        precision=lax.Precision.HIGHEST,       # exact f32; single dot -> pass
        preferred_element_type=jnp.float32)    # multiplier cost is negligible


# ----------------------------------------------------------------------------
# Host-side construction (mirror of LQR.__init__, deterministic).
# ----------------------------------------------------------------------------
def build_cost_and_dynamics(cfg):
    T = cfg['future_num_frames'] + 1
    acc_w = cfg['acc_w']
    control_w = cfg['control_w']
    dt = cfg['step_time']
    n_ctrl = 2
    n = 2 if control_w == 0 else 3
    n_state = n * n_ctrl
    tau = n_state + n_ctrl

    C = np.zeros((T, tau, tau), np.float32)
    C[1:, 0, 0] = 1.0
    C[1:, 1, 1] = 1.0
    C[:, n_ctrl * 2, n_ctrl * 2] = acc_w
    C[:, n_ctrl * 2 + 1, n_ctrl * 2 + 1] = acc_w
    if control_w != 0:
        C[1:, n_ctrl * 3, n_ctrl * 3] = control_w
        C[1:, n_ctrl * 3 + 1, n_ctrl * 3 + 1] = control_w

    F = np.zeros((n_state, tau), np.float32)
    for i in range(n_ctrl * n):
        F[i, i] = 1.0
        F[i, i + n_ctrl] = dt
    for i in range(n_ctrl * (n - 1)):
        F[i, i + n_ctrl * 2] = dt * dt
    if control_w != 0:
        for i in range(n_ctrl):
            F[i, i + n_ctrl * 3] = dt * dt
        F[:, -n_ctrl:] /= dt
    return C, F, n_state, n_ctrl


def _solve_lqr_np(x_init, target, C, F):
    """Exact finite-horizon LQR (simplified symmetric-Q Riccati), float64.

    Used only for the one-time host precompute of the affine gain.
    Returns plan of shape (nb, t, n_ctrl)."""
    n_state, tau = F.shape
    n_ctrl = tau - n_state
    nb, t, _ = target.shape
    T = t + 1
    C = np.asarray(C, np.float64)
    F = np.asarray(F, np.float64)
    c = np.zeros((T, nb, tau), np.float64)
    c[1:, :, :n_ctrl] = -np.transpose(np.asarray(target, np.float64), (1, 0, 2))

    V = np.zeros((n_state, n_state))
    v = np.zeros((nb, n_state))
    Ks, ks = [None] * T, [None] * T
    for tt in range(T - 1, -1, -1):
        Q = C[tt] + F.T @ V @ F
        q = c[tt] + v @ F
        Qxx, Qxu = Q[:n_state, :n_state], Q[:n_state, n_state:]
        Qux, Quu = Q[n_state:, :n_state], Q[n_state:, n_state:]
        qx, qu = q[:, :n_state], q[:, n_state:]
        Quu_inv = np.linalg.inv(Quu)
        K = -Quu_inv @ Qux
        k = -qu @ Quu_inv
        Ks[tt], ks[tt] = K, k
        # Valid because K/k are exact unregularized minimizers of symmetric Q.
        V = Qxx + Qxu @ K
        v = qx + k @ Qux

    x = np.asarray(x_init, np.float64)
    traj = [x]
    for tt in range(T - 1):
        u = x @ Ks[tt].T + ks[tt]
        x = np.concatenate([x, u], axis=-1) @ F.T
        traj.append(x)
    xtraj = np.stack(traj, 0)
    return np.transpose(xtraj[1:, :, :n_ctrl], (1, 0, 2))


def precompute_affine_gain(C, F, t):
    """Host f64 precompute of the exact linear map (x_init, target) -> plan.

    The plan is linear (no bias: zero inputs give a zero plan), so feeding the
    basis vectors of (x_init, target_flat) as a "batch" through the exact
    Riccati solve yields the full map W of shape (d_in, t*n_ctrl)."""
    n_state, tau = F.shape
    n_ctrl = tau - n_state
    d_out = t * n_ctrl
    d_in = n_state + d_out

    x_basis = np.zeros((d_in, n_state), np.float64)
    x_basis[:n_state] = np.eye(n_state)
    tgt_basis = np.zeros((d_in, t, n_ctrl), np.float64)
    tgt_basis[n_state:] = np.eye(d_out).reshape(d_out, t, n_ctrl)

    plan_basis = _solve_lqr_np(x_basis, tgt_basis, C, F)    # (d_in, t, n_ctrl)
    return plan_basis.reshape(d_in, d_out).astype(np.float32)


# ----------------------------------------------------------------------------
# Forward wrapper (equivalent of LQR.forward).
# ----------------------------------------------------------------------------
def lqr_plan(x_init, last_action_preds, W, n_ctrl):
    nb = x_init.shape[0]
    t = last_action_preds.shape[1]
    d_out = t * n_ctrl
    n_state = W.shape[0] - d_out
    assert x_init.shape[1] == n_state and W.shape[1] == d_out

    target = last_action_preds[..., :n_ctrl].astype(jnp.float32)   # (B, t, 2)
    # Lane-packed single-tile input: [x_init | target_flat]  -> (B, 20).
    inp = jnp.concatenate(
        [x_init.astype(jnp.float32), target.reshape(nb, d_out)], axis=-1)

    out = pl.pallas_call(
        lqr_affine_kernel,
        out_shape=jax.ShapeDtypeStruct((nb, d_out), jnp.float32),
        in_specs=[pl.BlockSpec(memory_space=pltpu.MemorySpace.VMEM)] * 2,
        out_specs=pl.BlockSpec(memory_space=pltpu.MemorySpace.VMEM),
        # Note (v7x): for large batches, add grid=(nb // blk,) over batch with
        # dimension_semantics=("parallel",) to use both TensorCores.
    )(inp, jnp.asarray(W))

    return out.reshape(nb, t, n_ctrl)


# ----------------------------------------------------------------------------
# Independent numpy reference (full, non-simplified Riccati recursion) run on
# the actual inputs — cross-checks the affine collapse and the kernel plumbing.
# ----------------------------------------------------------------------------
def lqr_plan_reference(x_init, last_action_preds, C, F):
    n_state, tau = F.shape
    n_ctrl = tau - n_state
    target = np.asarray(last_action_preds)[..., :n_ctrl].astype(np.float64)
    nb, t, _ = target.shape
    T = t + 1
    C = np.asarray(C, np.float64)
    F = np.asarray(F, np.float64)
    c = np.zeros((T, nb, tau), np.float64)
    c[1:, :, :n_ctrl] = -np.transpose(target, (1, 0, 2))

    V = np.zeros((n_state, n_state))
    v = np.zeros((nb, n_state))
    Ks, ks = [None] * T, [None] * T
    for tt in range(T - 1, -1, -1):
        Q = C[tt] + F.T @ V @ F
        q = c[tt] + v @ F
        Qxx, Qxu = Q[:n_state, :n_state], Q[:n_state, n_state:]
        Qux, Quu = Q[n_state:, :n_state], Q[n_state:, n_state:]
        qx, qu = q[:, :n_state], q[:, n_state:]
        Quu_inv = np.linalg.inv(Quu)
        K = -Quu_inv @ Qux
        k = -qu @ Quu_inv.T
        Ks[tt], ks[tt] = K, k
        V = Qxx + Qxu @ K + K.T @ Qux + K.T @ Quu @ K
        v = qx + k @ Qxu.T + (qu + k @ Quu.T) @ K

    x = np.asarray(x_init, np.float64)
    traj = [x]
    for tt in range(T - 1):
        u = x @ Ks[tt].T + ks[tt]
        x = np.concatenate([x, u], axis=-1) @ F.T
        traj.append(x)
    xtraj = np.stack(traj, 0)
    return np.transpose(xtraj[1:, :, :n_ctrl], (1, 0, 2)).astype(np.float32)


if __name__ == "__main__":
    # TODO(synk): LQR_solver's line-search / multi-iteration refinement is a
    # no-op for exactly-linear dynamics with lqr_iter=1, so it is not modeled.
    cfg = {'future_num_frames': 8, 'acc_w': 1.0, 'control_w': 0.0,
           'step_time': 0.5}
    C, F, n_state, n_ctrl = build_cost_and_dynamics(cfg)
    # One-time host-side (module-init) precompute of the affine-map gain.
    W = precompute_affine_gain(C, F, cfg['future_num_frames'])

    key = jax.random.PRNGKey(0)
    k1, k2 = jax.random.split(key)
    n_batch = 2
    x_init = jax.random.normal(k1, (n_batch, n_state), jnp.float32)
    # last_action_preds: (B, future_num_frames, 3); only [..., :2] is used.
    last_action_preds = 2.0 * jax.random.normal(
        k2, (n_batch, cfg['future_num_frames'], 3), jnp.float32)

    plan_fn = jax.jit(lambda xi, lap: lqr_plan(xi, lap, W, n_ctrl))
    plan = jax.block_until_ready(plan_fn(x_init, last_action_preds))

    assert plan.shape == (n_batch, cfg['future_num_frames'], n_ctrl)
    ref = lqr_plan_reference(np.asarray(x_init), np.asarray(last_action_preds),
                             C, F)
    np.testing.assert_allclose(np.asarray(plan), ref, rtol=1e-2, atol=1e-2)
    print("KERNEL_OK")
</pallas_src>

<mosaic_0001>
module attributes {stable_mosaic.version = 11 : i64} {
  func.func @lqr_affine_kernel(%arg0: memref<2x20xf32, #tpu.memory_space<vmem>>, %arg1: memref<20x16xf32, #tpu.memory_space<vmem>>, %arg2: memref<2x16xf32, #tpu.memory_space<vmem>>) attributes {dimension_semantics = [], scalar_prefetch = 0 : i64, scratch_operands = 0 : i64, tpu.core_type = #tpu.core_type<tc>} {
    %c0 = arith.constant 0 : index
    %c0_0 = arith.constant 0 : index
    %0 = vector.load %arg0[%c0, %c0_0] : memref<2x20xf32, #tpu.memory_space<vmem>>, vector<2x20xf32>
    %c0_1 = arith.constant 0 : index
    %c0_2 = arith.constant 0 : index
    %1 = vector.load %arg1[%c0_1, %c0_2] : memref<20x16xf32, #tpu.memory_space<vmem>>, vector<20x16xf32>
    %cst = arith.constant dense<0.000000e+00> : vector<2x16xf32>
    %2 = tpu.matmul %0, %1, %cst {dimension_numbers = #tpu.dot_dimension_numbers<[1], [0], [0], [1], [0, 0, 1, 1], [], []>, precision = #tpu.contract_precision<fp32>} : vector<2x20xf32>, vector<20x16xf32>, vector<2x16xf32> -> vector<2x16xf32>
    %c0_3 = arith.constant 0 : index
    %c0_4 = arith.constant 0 : index
    %3 = vector.load %arg2[%c0_3, %c0_4] : memref<2x16xf32, #tpu.memory_space<vmem>>, vector<2x16xf32>
    tpu.vector_store %arg2[%c0_3, %c0_4], %2 {strides = array<i32>} : memref<2x16xf32, #tpu.memory_space<vmem>>, vector<2x16xf32>,
    return
  }
}

</mosaic_0001>

<llo_original>
// kernel: _lambda_.1
$region0: #{_lambda_.1}
  #allocation0 [shape = 'u32[]', space=smem, size = 0x4, offset = 0x4, fixed_abs, tag = 'smem constant byte address 0x4 - core index']
  #allocation1 [shape = 'u32[72,128]{1,0:T(1,128)}', space=vmem, size = 0x9000, scoped, tag = 'internal scratch']
  %s0 = inlined_call_operand.vmem [shape: f32[2,20], index: 0, kind: input, shape index: {}]
  %s1 = inlined_call_operand.vmem [shape: f32[20,16], index: 1, kind: input, shape index: {}]
  %s2 = inlined_call_operand.vmem [shape: f32[2,16], index: 2, kind: output, shape index: {}]
  %s3 = sld [smem:[#allocation0]]
  $region18: #{_lambda_.1} parent=0
    _
  %s5 = ssub.s32 1, %s3
  %s6 = scalar_select 0, %s5, %s3
  // Predicated region
  $region2: #{_lambda_.1} parent=0 // pred_check
    _
  $region3: #{_lambda_.1} parent=0 // pred_check_branch
    %8 = sbr.rel (0) target = $region5
  $region4: #{_lambda_.1} parent=0 // pred_region
    _
  $region5: #{_lambda_.1} parent=0 // pred_fallthru
    _
  // Predicated region
  $region6: #{_lambda_.1} parent=0 // pred_check
    _
  $region7: #{_lambda_.1} parent=0 // pred_check_branch
    %10 = sbr.rel (0) target = $region9
  $region8: #{_lambda_.1} parent=0 // pred_region
    _
  $region9: #{_lambda_.1} parent=0 // pred_fallthru
    _
  %v11 = vld [vmem:[%s0] sm:$0x3]
  %v12 = vld [vmem:[%s1] sm:$0xff]
  %v13 = vld [vmem:[%s1 + $0x8] sm:$0xff]
  %v14 = vld [vmem:[%s1 + $0x10] sm:$0xf]
  %vm15 = vcmask 162816
  %v17 = vsel %vm15, %v11, 0
  %vm19 = vcmask 1043456
  %v21 = vsel %vm19, %v14, 0
  %23 = vmatpush.msra.mxu0 0.0
  %24 = vmatpush.msra.mxu0 0.0
  %25 = vmatpush.msra.mxu0 0.0
  %26 = vmatpush.msra.mxu0 0.0
  %27 = vmatpush.msra.mxu0 0.0
  %28 = vmatpush.msra.mxu0 0.0
  %29 = vmatpush.msra.mxu0 0.0
  %30 = vmatpush.msra.mxu0 0.0
  %31 = vmatpush.msra.mxu0 0.0
  %32 = vmatpush.msra.mxu0 0.0
  %33 = vmatpush.msra.mxu0 0.0
  %34 = vmatpush.msra.mxu0 0.0
  %35 = vmatpush.msra.mxu0 0.0
  %v36 = vand.u32 %v21, 4294901760
  %37 = vmatpush.msra.mxu0 %v36
  %v38 = vand.u32 %v13, 4294901760
  %39 = vmatpush.msra.mxu0 %v38
  %v40 = vand.u32 %v12, 4294901760
  %41 = vmatpush.msra.mxu0 %v40
  %v42 = vand.u32 %v17, 4294901760
  %v43 = vsub.f32 %v17, %v42
  %v44 = vand.u32 %v43, 4294901760
  %v45 = vsub.f32 %v43, %v44
  %v46 = vand.u32 %v45, 4294901760
  %47 = vmatmul.f32.gmra.mxu0 %v46
  %v48 = vpop.f32.mrf.mxu0
  %v49 = vadd.f32 0.0, %v48
  %50 = vdwg.mxu0
  %51 = vmatpush.msra.mxu0 0.0
  %52 = vmatpush.msra.mxu0 0.0
  %53 = vmatpush.msra.mxu0 0.0
  %54 = vmatpush.msra.mxu0 0.0
  %55 = vmatpush.msra.mxu0 0.0
  %56 = vmatpush.msra.mxu0 0.0
  %57 = vmatpush.msra.mxu0 0.0
  %58 = vmatpush.msra.mxu0 0.0
  %59 = vmatpush.msra.mxu0 0.0
  %60 = vmatpush.msra.mxu0 0.0
  %61 = vmatpush.msra.mxu0 0.0
  %62 = vmatpush.msra.mxu0 0.0
  %63 = vmatpush.msra.mxu0 0.0
  %v64 = vand.u32 %v21, 4294901760
  %v65 = vsub.f32 %v21, %v64
  %v66 = vand.u32 %v65, 4294901760
  %v67 = vsub.f32 %v65, %v66
  %v68 = vand.u32 %v67, 4294901760
  %69 = vmatpush.msra.mxu0 %v68
  %v70 = vand.u32 %v13, 4294901760
  %v71 = vsub.f32 %v13, %v70
  %v72 = vand.u32 %v71, 4294901760
  %v73 = vsub.f32 %v71, %v72
  %v74 = vand.u32 %v73, 4294901760
  %75 = vmatpush.msra.mxu0 %v74
  %v76 = vand.u32 %v12, 4294901760
  %v77 = vsub.f32 %v12, %v76
  %v78 = vand.u32 %v77, 4294901760
  %v79 = vsub.f32 %v77, %v78
  %v80 = vand.u32 %v79, 4294901760
  %81 = vmatpush.msra.mxu0 %v80
  %v82 = vand.u32 %v17, 4294901760
  %83 = vmatmul.f32.gmra.mxu0 %v82
  %v84 = vpop.f32.mrf.mxu0
  %v85 = vadd.f32 %v49, %v84
  %86 = vdwg.mxu0
  %87 = vmatpush.msra.mxu0 0.0
  %88 = vmatpush.msra.mxu0 0.0
  %89 = vmatpush.msra.mxu0 0.0
  %90 = vmatpush.msra.mxu0 0.0
  %91 = vmatpush.msra.mxu0 0.0
  %92 = vmatpush.msra.mxu0 0.0
  %93 = vmatpush.msra.mxu0 0.0
  %94 = vmatpush.msra.mxu0 0.0
  %95 = vmatpush.msra.mxu0 0.0
  %96 = vmatpush.msra.mxu0 0.0
  %97 = vmatpush.msra.mxu0 0.0
  %98 = vmatpush.msra.mxu0 0.0
  %99 = vmatpush.msra.mxu0 0.0
  %v100 = vand.u32 %v21, 4294901760
  %v101 = vsub.f32 %v21, %v100
  %102 = vmatpush.msra.mxu0 %v101
  %v103 = vand.u32 %v13, 4294901760
  %v104 = vsub.f32 %v13, %v103
  %105 = vmatpush.msra.mxu0 %v104
  %v106 = vand.u32 %v12, 4294901760
  %v107 = vsub.f32 %v12, %v106
  %108 = vmatpush.msra.mxu0 %v107
  %v109 = vand.u32 %v17, 4294901760
  %v110 = vsub.f32 %v17, %v109
  %111 = vmatmul.f32.gmra.mxu0 %v110
  %v112 = vpop.f32.mrf.mxu0
  %v113 = vadd.f32 %v85, %v112
  %114 = vdwg.mxu0
  %115 = vmatpush.msra.mxu0 0.0
  %116 = vmatpush.msra.mxu0 0.0
  %117 = vmatpush.msra.mxu0 0.0
  %118 = vmatpush.msra.mxu0 0.0
  %119 = vmatpush.msra.mxu0 0.0
  %120 = vmatpush.msra.mxu0 0.0
  %121 = vmatpush.msra.mxu0 0.0
  %122 = vmatpush.msra.mxu0 0.0
  %123 = vmatpush.msra.mxu0 0.0
  %124 = vmatpush.msra.mxu0 0.0
  %125 = vmatpush.msra.mxu0 0.0
  %126 = vmatpush.msra.mxu0 0.0
  %127 = vmatpush.msra.mxu0 0.0
  %v128 = vand.u32 %v21, 4294901760
  %129 = vmatpush.msra.mxu0 %v128
  %v130 = vand.u32 %v13, 4294901760
  %131 = vmatpush.msra.mxu0 %v130
  %v132 = vand.u32 %v12, 4294901760
  %133 = vmatpush.msra.mxu0 %v132
  %v134 = vand.u32 %v17, 4294901760
  %v135 = vsub.f32 %v17, %v134
  %v136 = vand.u32 %v135, 4294901760
  %137 = vmatmul.f32.gmra.mxu0 %v136
  %v138 = vpop.f32.mrf.mxu0
  %v139 = vadd.f32 %v113, %v138
  %140 = vdwg.mxu0
  %141 = vmatpush.msra.mxu0 0.0
  %142 = vmatpush.msra.mxu0 0.0
  %143 = vmatpush.msra.mxu0 0.0
  %144 = vmatpush.msra.mxu0 0.0
  %145 = vmatpush.msra.mxu0 0.0
  %146 = vmatpush.msra.mxu0 0.0
  %147 = vmatpush.msra.mxu0 0.0
  %148 = vmatpush.msra.mxu0 0.0
  %149 = vmatpush.msra.mxu0 0.0
  %150 = vmatpush.msra.mxu0 0.0
  %151 = vmatpush.msra.mxu0 0.0
  %152 = vmatpush.msra.mxu0 0.0
  %153 = vmatpush.msra.mxu0 0.0
  %v154 = vand.u32 %v21, 4294901760
  %v155 = vsub.f32 %v21, %v154
  %v156 = vand.u32 %v155, 4294901760
  %157 = vmatpush.msra.mxu0 %v156
  %v158 = vand.u32 %v13, 4294901760
  %v159 = vsub.f32 %v13, %v158
  %v160 = vand.u32 %v159, 4294901760
  %161 = vmatpush.msra.mxu0 %v160
  %v162 = vand.u32 %v12, 4294901760
  %v163 = vsub.f32 %v12, %v162
  %v164 = vand.u32 %v163, 4294901760
  %165 = vmatpush.msra.mxu0 %v164
  %v166 = vand.u32 %v17, 4294901760
  %167 = vmatmul.f32.gmra.mxu0 %v166
  %v168 = vpop.f32.mrf.mxu0
  %v169 = vadd.f32 %v139, %v168
  %170 = vdwg.mxu0
  %171 = vmatpush.msra.mxu0 0.0
  %172 = vmatpush.msra.mxu0 0.0
  %173 = vmatpush.msra.mxu0 0.0
  %174 = vmatpush.msra.mxu0 0.0
  %175 = vmatpush.msra.mxu0 0.0
  %176 = vmatpush.msra.mxu0 0.0
  %177 = vmatpush.msra.mxu0 0.0
  %178 = vmatpush.msra.mxu0 0.0
  %179 = vmatpush.msra.mxu0 0.0
  %180 = vmatpush.msra.mxu0 0.0
  %181 = vmatpush.msra.mxu0 0.0
  %182 = vmatpush.msra.mxu0 0.0
  %183 = vmatpush.msra.mxu0 0.0
  %v184 = vand.u32 %v21, 4294901760
  %185 = vmatpush.msra.mxu0 %v184
  %v186 = vand.u32 %v13, 4294901760
  %187 = vmatpush.msra.mxu0 %v186
  %v188 = vand.u32 %v12, 4294901760
  %189 = vmatpush.msra.mxu0 %v188
  %v190 = vand.u32 %v17, 4294901760
  %191 = vmatmul.f32.gmra.mxu0 %v190
  %v192 = vpop.f32.mrf.mxu0
  %v193 = vadd.f32 %v169, %v192
  %194 = vdwg.mxu0
  %vm195 = vcmask 123904
  %196 = vst.msk [vmem:[%s2] sm:$0x3] %vm195, %v193
  // Predicated region
  $region10: #{_lambda_.1} parent=0 // pred_check
    _
  $region11: #{_lambda_.1} parent=0 // pred_check_branch
    %198 = sbr.rel (0) target = $region13
  $region12: #{_lambda_.1} parent=0 // pred_region
    _
  $region13: #{_lambda_.1} parent=0 // pred_fallthru
    _
  // Predicated region
  $region14: #{_lambda_.1} parent=0 // pred_check
    _
  $region15: #{_lambda_.1} parent=0 // pred_check_branch
    %200 = sbr.rel (0) target = $region17
  $region16: #{_lambda_.1} parent=0 // pred_region
    _
  $region17: #{_lambda_.1} parent=0 // pred_fallthru
    _

</llo_original>
